<compile_context>
chip_gen: v7x
topology: tpu7x:2x2x1
jax: 0.10.0
libtpu: 0.0.40
codegen_flags: <defaults>
</compile_context>

<pallas_src>
import functools

import jax
import jax.numpy as jnp
from jax.experimental import pallas as pl
from jax.experimental.pallas import tpu as pltpu

_LANE = 128      # lane width: pad all feature dims to a multiple of this
_SUBLANE = 8     # sublane tile: batch tile must be a multiple of this


def _round_up(n, m):
    return ((n + m - 1) // m) * m


def _supports_pipeline_mode():
    """Feature-detect BlockSpec(pipeline_mode=...) so older jax still runs (double-buffered)."""
    try:
        pl.BlockSpec((_SUBLANE, _LANE), lambda i: (0, 0), pipeline_mode=pl.Buffered(1))
        return True
    except Exception:
        return False


_HAS_PIPELINE_MODE = _supports_pipeline_mode()


def _resident_spec(shape):
    """Full-array block with a constant index_map: VMEM-resident across all batch tiles.

    Single-buffered (pl.Buffered(1)) when supported — the block index never changes, so a
    second buffer is pure VMEM waste. Rank is bound explicitly (no late-binding bug).
    """
    ndim = len(shape)
    index_map = lambda i, _nd=ndim: (0,) * _nd
    if _HAS_PIPELINE_MODE:
        return pl.BlockSpec(shape, index_map, pipeline_mode=pl.Buffered(1))
    return pl.BlockSpec(shape, index_map)


def _mlp_kernel(*refs, num_layers):
    """Fused MLP kernel.

    refs = (x_ref, w0, b0, w1, b1, ..., o_ref)
      x_ref : (TB, D0_pad)        bf16 batch tile
      w_k   : (Dk_pad, Dk+1_pad)  bf16, VMEM-resident
      b_k   : (1, Dk+1_pad)       f32,  VMEM-resident
      o_ref : (TB, Dlast_pad)     output batch tile
    """
    x_ref, o_ref = refs[0], refs[-1]
    param_refs = refs[1:-1]

    h = x_ref[...]                                    # bf16 straight from HBM (half the DMA)
    for layer in range(num_layers):
        w = param_refs[2 * layer][...]                # bf16 (Din_pad, Dout_pad)
        b = param_refs[2 * layer + 1][...]            # f32  (1, Dout_pad)
        if h.dtype != jnp.bfloat16:
            h = h.astype(jnp.bfloat16)
        # bf16 x bf16 -> f32 accumulation on the MXU.
        h = jnp.dot(h, w, preferred_element_type=jnp.float32)
        # Bias add + ReLU in f32 on the VPU. Hidden layers use ReLU; the final layer uses
        # the module's activation_function, which here is also ReLU.
        h = jnp.maximum(h + b, 0.0)
    o_ref[...] = h.astype(o_ref.dtype)


def prepare_params(weights, biases):
    """One-time parameter prep: lane-pad feature dims and cast weights to bf16.

    Hoisted out of the forward path so each call does NOT re-read/re-write the whole
    parameter set just to pad/cast it.

    Args:
      weights: list of (in_features, out_features) float arrays (PyTorch's (out,in) W is
               assumed already transposed so the kernel computes x @ W + b).
      biases:  list of (out_features,) or (1, out_features) float arrays.
    Returns:
      (padded_weights_bf16, padded_biases_f32, dims) where dims = (in, h1, ..., out).
    """
    in_dim = int(weights[0].shape[0])
    dims = (in_dim,) + tuple(int(w.shape[1]) for w in weights)
    pdims = [_round_up(d, _LANE) for d in dims]
    # NOTE: on v6e/v7x, padding to 256 (2x256x256 MXU) only matters once layers are wide
    # enough to be compute-bound; at these sizes the kernel is DMA-bound so 128 is fine.

    w_pad, b_pad = [], []
    for k, (w, b) in enumerate(zip(weights, biases)):
        fin, fout = w.shape
        pfin, pfout = pdims[k], pdims[k + 1]
        wp = jnp.zeros((pfin, pfout), jnp.bfloat16).at[:fin, :fout].set(
            jnp.asarray(w, jnp.bfloat16))
        bp = jnp.zeros((1, pfout), jnp.float32).at[:, :fout].set(
            jnp.asarray(b, jnp.float32).reshape(1, -1))
        w_pad.append(wp)
        b_pad.append(bp)
    return w_pad, b_pad, dims


def _estimate_vmem_bytes(tb, pdims, out_bytes):
    """Rough VMEM working-set estimate for a given batch tile."""
    act_in = 2 * tb * pdims[0] * 2             # double-buffered bf16 x tiles
    act_out = 2 * tb * pdims[-1] * out_bytes   # double-buffered output tiles
    w_bytes = sum(pdims[k] * pdims[k + 1] * 2 for k in range(len(pdims) - 1))  # bf16, 1-buffered
    b_bytes = sum(p * 4 for p in pdims[1:])
    live = 2 * tb * max(pdims) * 4             # in-flight f32 activations (rough upper bound)
    return act_in + act_out + w_bytes + b_bytes + live


def fully_connected_nn_forward(x, padded_weights, padded_biases, dims, *,
                               block_batch=512, out_dtype=jnp.float32,
                               vmem_budget_bytes=40 << 20, interpret=False):
    """Fused MLP forward via one Pallas kernel.

    Args:
      x: (batch, input_dim) float array.
      padded_weights / padded_biases / dims: output of prepare_params().
      block_batch: target rows per batch tile for LARGE batches (512-1024 reaches the HBM
        roofline; small batches are auto-split into at most two minimally-padded tiles).
        The tile is capped so 2x-buffered activations + resident bf16 weights fit
        vmem_budget_bytes (keep this well under 64 MiB on v7x; v5e/v6e have 128 MiB).
      out_dtype: jnp.float32 (default, matches the PyTorch module) or jnp.bfloat16 to halve
        the output write stream if the consumer tolerates it.
    Returns:
      (batch, output_dim) array of out_dtype.
    """
    num_layers = len(padded_weights)
    batch, in_dim = x.shape
    assert in_dim == dims[0], "x width does not match prepared parameters"
    out_dim = dims[-1]
    pdims = [padded_weights[0].shape[0]] + [w.shape[1] for w in padded_weights]
    out_bytes = jnp.dtype(out_dtype).itemsize

    # ---- batch tile selection ------------------------------------------------
    block_batch = max(_SUBLANE, _round_up(block_batch, _SUBLANE))
    if batch <= 2 * block_batch:
        # Small batch: at most two minimally-padded tiles (two grid steps keep both v7x
        # TensorCores busy) instead of padding up to a block_batch multiple.
        n_tiles = 2 if batch > _SUBLANE else 1
    else:
        # Large batch: big tiles amortize the ~0.35 us/step overhead and hit the HBM
        # roofline; distribute rows evenly so the last tile is not mostly zero padding.
        n_tiles = int(pl.cdiv(batch, block_batch))
    tb = _round_up(int(pl.cdiv(batch, n_tiles)), _SUBLANE)
    # Cap against the VMEM budget (v7x: 64 MiB physical; v5e default scoped is ~16 MiB).
    while tb > _SUBLANE and _estimate_vmem_bytes(tb, pdims, out_bytes) > vmem_budget_bytes:
        tb = max(_SUBLANE, _round_up(tb // 2, _SUBLANE))
    # If the resident bf16 weights alone exceed the budget, a K-pipelined variant
    # (reduction grid axis + f32 VMEM accumulator) would be required instead.

    batch_p = _round_up(batch, tb)
    grid = (batch_p // tb,)

    # ---- lane-padded bf16 input tile ------------------------------------------
    # Zero padding is inert: zero K-columns of x meet zero rows of W; padded batch rows
    # are sliced off right after the kernel.
    x_p = jnp.zeros((batch_p, pdims[0]), jnp.bfloat16)
    x_p = x_p.at[:batch, :in_dim].set(x.astype(jnp.bfloat16))

    operands = [x_p]
    in_specs = [pl.BlockSpec((tb, pdims[0]), lambda i: (i, 0))]
    for wp, bp in zip(padded_weights, padded_biases):
        operands += [wp, bp]
        in_specs += [_resident_spec(wp.shape), _resident_spec(bp.shape)]
    out_spec = pl.BlockSpec((tb, pdims[-1]), lambda i: (i, 0))   # lane-dense 128-wide stores

    # ---- scheduler hints -------------------------------------------------------
    flops = 2 * batch_p * sum(pdims[k] * pdims[k + 1] for k in range(num_layers))
    bytes_accessed = (x_p.size * x_p.dtype.itemsize
                      + sum(w.size * w.dtype.itemsize for w in padded_weights)
                      + sum(b.size * b.dtype.itemsize for b in padded_biases)
                      + batch_p * pdims[-1] * out_bytes)
    cost = pl.CostEstimate(flops=int(flops), transcendentals=0,
                           bytes_accessed=int(bytes_accessed))

    est = _estimate_vmem_bytes(tb, pdims, out_bytes)
    # Explicit scoped-VMEM limit: v5e's default is only ~16 MiB; cap at 48 MiB so the same
    # setting leaves headroom on v7x's 64 MiB physical VMEM.
    vmem_limit = int(min(max(2 * est + (4 << 20), 32 << 20), 48 << 20))

    out_p = pl.pallas_call(
        functools.partial(_mlp_kernel, num_layers=num_layers),
        out_shape=jax.ShapeDtypeStruct((batch_p, pdims[-1]), out_dtype),
        grid=grid,
        in_specs=in_specs,
        out_specs=out_spec,
        compiler_params=pltpu.CompilerParams(
            dimension_semantics=("parallel",),      # batch tiles shard across TensorCores
            vmem_limit_bytes=vmem_limit,
        ),
        cost_estimate=cost,
        interpret=interpret,
    )(*operands)

    # Keep this slice adjacent to the kernel: padded batch rows hold relu(bias) != 0 and
    # padded output columns are zero; both must never reach a downstream reduction.
    return out_p[:batch, :out_dim]


def init_params(key, input_dim, output_dim, layers_sizes):
    """Deterministic PyTorch-Linear-style init: U(-1/sqrt(fan_in), +1/sqrt(fan_in))."""
    dims = [input_dim] + list(layers_sizes) + [output_dim]
    weights, biases = [], []
    for i in range(len(dims) - 1):
        fan_in, fan_out = dims[i], dims[i + 1]
        key, wk, bk = jax.random.split(key, 3)
        bound = 1.0 / jnp.sqrt(jnp.float32(fan_in))
        # stored as (in, out) so the kernel computes x @ W + b (PyTorch's (out, in) W.T is
        # absorbed here, once, outside the kernel).
        w = jax.random.uniform(wk, (fan_in, fan_out), jnp.float32, -bound, bound)
        b = jax.random.uniform(bk, (fan_out,), jnp.float32, -bound, bound)
        weights.append(w)
        biases.append(b)
    return weights, biases


if __name__ == "__main__":
    # Small shapes implied by the module. batch=200 is deliberately NOT a tile multiple:
    # it exercises the small-batch path (two 104-row tiles -> grid=(2,), both v7x cores busy,
    # minimal zero-row padding) plus the feature-dim padding/slicing path.
    batch = 200
    input_dim = 32
    layers_sizes = [64, 32]   # two hidden layers
    output_dim = 16

    key = jax.random.PRNGKey(0)
    key, xk = jax.random.split(key)
    x = jax.random.normal(xk, (batch, input_dim), jnp.float32)

    weights, biases = init_params(key, input_dim, output_dim, layers_sizes)

    # One-time parameter prep (lane pad + bf16 cast) — NOT repeated per forward call.
    w_pad, b_pad, dims = prepare_params(weights, biases)

    fwd = jax.jit(functools.partial(fully_connected_nn_forward, dims=dims))
    out = jax.block_until_ready(fwd(x, w_pad, b_pad))

    # Pure-JAX reference with the same bf16-operand / f32-accumulate semantics.
    ref = x
    for w, b in zip(weights, biases):
        ref = jnp.dot(ref.astype(jnp.bfloat16), jnp.asarray(w, jnp.bfloat16),
                      preferred_element_type=jnp.float32) + b.reshape(1, -1)
        ref = jnp.maximum(ref, 0.0)

    assert out.shape == (batch, output_dim)
    assert jnp.allclose(out, ref, atol=1e-3, rtol=1e-3)

    print("KERNEL_OK")
</pallas_src>

<mosaic_0001>
module attributes {stable_mosaic.version = 11 : i64} {
  func.func @_mlp_kernel(%arg0: i32, %arg1: memref<104x128xbf16, #tpu.memory_space<vmem>>, %arg2: memref<128x128xbf16, #tpu.memory_space<vmem>>, %arg3: memref<1x128xf32, #tpu.memory_space<vmem>>, %arg4: memref<128x128xbf16, #tpu.memory_space<vmem>>, %arg5: memref<1x128xf32, #tpu.memory_space<vmem>>, %arg6: memref<128x128xbf16, #tpu.memory_space<vmem>>, %arg7: memref<1x128xf32, #tpu.memory_space<vmem>>, %arg8: memref<104x128xf32, #tpu.memory_space<vmem>>) attributes {dimension_semantics = [#tpu.dimension_semantics<parallel>], iteration_bounds = array<i64: 2>, scalar_prefetch = 0 : i64, scratch_operands = 0 : i64, tpu.core_type = #tpu.core_type<tc>, window_params = [{transform_indices = @transform_0, window_bounds = array<i64: 104, 128>}, {pipeline_mode = #tpu.pipeline_mode<synchronous>, transform_indices = @transform_1, window_bounds = array<i64: 128, 128>}, {pipeline_mode = #tpu.pipeline_mode<synchronous>, transform_indices = @transform_2, window_bounds = array<i64: 1, 128>}, {pipeline_mode = #tpu.pipeline_mode<synchronous>, transform_indices = @transform_3, window_bounds = array<i64: 128, 128>}, {pipeline_mode = #tpu.pipeline_mode<synchronous>, transform_indices = @transform_4, window_bounds = array<i64: 1, 128>}, {pipeline_mode = #tpu.pipeline_mode<synchronous>, transform_indices = @transform_5, window_bounds = array<i64: 128, 128>}, {pipeline_mode = #tpu.pipeline_mode<synchronous>, transform_indices = @transform_6, window_bounds = array<i64: 1, 128>}, {transform_indices = @transform_7, window_bounds = array<i64: 104, 128>}]} {
    %c0 = arith.constant 0 : index
    %c0_0 = arith.constant 0 : index
    %0 = vector.load %arg1[%c0, %c0_0] : memref<104x128xbf16, #tpu.memory_space<vmem>>, vector<104x128xbf16>
    %c0_1 = arith.constant 0 : index
    %c0_2 = arith.constant 0 : index
    %1 = vector.load %arg2[%c0_1, %c0_2] : memref<128x128xbf16, #tpu.memory_space<vmem>>, vector<128x128xbf16>
    %c0_3 = arith.constant 0 : index
    %c0_4 = arith.constant 0 : index
    %2 = vector.load %arg3[%c0_3, %c0_4] : memref<1x128xf32, #tpu.memory_space<vmem>>, vector<1x128xf32>
    %cst = arith.constant dense<0.000000e+00> : vector<104x128xf32>
    %3 = tpu.matmul %0, %1, %cst {dimension_numbers = #tpu.dot_dimension_numbers<[1], [0], [0], [1], [0, 0, 1, 1], [], []>} : vector<104x128xbf16>, vector<128x128xbf16>, vector<104x128xf32> -> vector<104x128xf32>
    %4 = vector.broadcast %2 : vector<1x128xf32> to vector<104x128xf32>
    %5 = arith.addf %3, %4 : vector<104x128xf32>
    %cst_5 = arith.constant 0.000000e+00 : f32
    %6 = vector.broadcast %cst_5 : f32 to vector<104x128xf32>
    %7 = arith.maximumf %5, %6 : vector<104x128xf32>
    %c0_6 = arith.constant 0 : index
    %c0_7 = arith.constant 0 : index
    %8 = vector.load %arg4[%c0_6, %c0_7] : memref<128x128xbf16, #tpu.memory_space<vmem>>, vector<128x128xbf16>
    %c0_8 = arith.constant 0 : index
    %c0_9 = arith.constant 0 : index
    %9 = vector.load %arg5[%c0_8, %c0_9] : memref<1x128xf32, #tpu.memory_space<vmem>>, vector<1x128xf32>
    %10 = arith.truncf %7 : vector<104x128xf32> to vector<104x128xbf16>
    %cst_10 = arith.constant dense<0.000000e+00> : vector<104x128xf32>
    %11 = tpu.matmul %10, %8, %cst_10 {dimension_numbers = #tpu.dot_dimension_numbers<[1], [0], [0], [1], [0, 0, 1, 1], [], []>} : vector<104x128xbf16>, vector<128x128xbf16>, vector<104x128xf32> -> vector<104x128xf32>
    %12 = vector.broadcast %9 : vector<1x128xf32> to vector<104x128xf32>
    %13 = arith.addf %11, %12 : vector<104x128xf32>
    %cst_11 = arith.constant 0.000000e+00 : f32
    %14 = vector.broadcast %cst_11 : f32 to vector<104x128xf32>
    %15 = arith.maximumf %13, %14 : vector<104x128xf32>
    %c0_12 = arith.constant 0 : index
    %c0_13 = arith.constant 0 : index
    %16 = vector.load %arg6[%c0_12, %c0_13] : memref<128x128xbf16, #tpu.memory_space<vmem>>, vector<128x128xbf16>
    %c0_14 = arith.constant 0 : index
    %c0_15 = arith.constant 0 : index
    %17 = vector.load %arg7[%c0_14, %c0_15] : memref<1x128xf32, #tpu.memory_space<vmem>>, vector<1x128xf32>
    %18 = arith.truncf %15 : vector<104x128xf32> to vector<104x128xbf16>
    %cst_16 = arith.constant dense<0.000000e+00> : vector<104x128xf32>
    %19 = tpu.matmul %18, %16, %cst_16 {dimension_numbers = #tpu.dot_dimension_numbers<[1], [0], [0], [1], [0, 0, 1, 1], [], []>} : vector<104x128xbf16>, vector<128x128xbf16>, vector<104x128xf32> -> vector<104x128xf32>
    %20 = vector.broadcast %17 : vector<1x128xf32> to vector<104x128xf32>
    %21 = arith.addf %19, %20 : vector<104x128xf32>
    %cst_17 = arith.constant 0.000000e+00 : f32
    %22 = vector.broadcast %cst_17 : f32 to vector<104x128xf32>
    %23 = arith.maximumf %21, %22 : vector<104x128xf32>
    %c0_18 = arith.constant 0 : index
    %c0_19 = arith.constant 0 : index
    %24 = vector.load %arg8[%c0_18, %c0_19] : memref<104x128xf32, #tpu.memory_space<vmem>>, vector<104x128xf32>
    tpu.vector_store %arg8[%c0_18, %c0_19], %23 {strides = array<i32>} : memref<104x128xf32, #tpu.memory_space<vmem>>, vector<104x128xf32>,
    return
  }
  func.func @transform_0(%arg0: i32) -> (i32, i32) {
    %c0_i32 = arith.constant 0 : i32
    %c0_i32_0 = arith.constant 0 : i32
    return %arg0, %c0_i32 : i32, i32
  }
  func.func @transform_1(%arg0: i32) -> (i32, i32) {
    %c0_i32 = arith.constant 0 : i32
    %c0_i32_0 = arith.constant 0 : i32
    %c0_i32_1 = arith.constant 0 : i32
    return %c0_i32, %c0_i32_0 : i32, i32
  }
  func.func @transform_2(%arg0: i32) -> (i32, i32) {
    %c0_i32 = arith.constant 0 : i32
    %c0_i32_0 = arith.constant 0 : i32
    %c0_i32_1 = arith.constant 0 : i32
    return %c0_i32, %c0_i32_0 : i32, i32
  }
  func.func @transform_3(%arg0: i32) -> (i32, i32) {
    %c0_i32 = arith.constant 0 : i32
    %c0_i32_0 = arith.constant 0 : i32
    %c0_i32_1 = arith.constant 0 : i32
    return %c0_i32, %c0_i32_0 : i32, i32
  }
  func.func @transform_4(%arg0: i32) -> (i32, i32) {
    %c0_i32 = arith.constant 0 : i32
    %c0_i32_0 = arith.constant 0 : i32
    %c0_i32_1 = arith.constant 0 : i32
    return %c0_i32, %c0_i32_0 : i32, i32
  }
  func.func @transform_5(%arg0: i32) -> (i32, i32) {
    %c0_i32 = arith.constant 0 : i32
    %c0_i32_0 = arith.constant 0 : i32
    %c0_i32_1 = arith.constant 0 : i32
    return %c0_i32, %c0_i32_0 : i32, i32
  }
  func.func @transform_6(%arg0: i32) -> (i32, i32) {
    %c0_i32 = arith.constant 0 : i32
    %c0_i32_0 = arith.constant 0 : i32
    %c0_i32_1 = arith.constant 0 : i32
    return %c0_i32, %c0_i32_0 : i32, i32
  }
  func.func @transform_7(%arg0: i32) -> (i32, i32) {
    %c0_i32 = arith.constant 0 : i32
    %c0_i32_0 = arith.constant 0 : i32
    return %arg0, %c0_i32 : i32, i32
  }
}

</mosaic_0001>

<llo_original>
// kernel: fully_connected_nn_forward.1
$region0: #{fully_connected_nn_forward.1}
  #allocation0 [shape = 'u32[]', space=smem, size = 0x4, offset = 0x4, fixed_abs, tag = 'smem constant byte address 0x4 - core index']
  #allocation1 [shape = 'u32[144,128]{1,0:T(1,128)}', space=vmem, size = 0x12000, scoped, tag = 'internal scratch']
  %s0 = inlined_call_operand.vmem [shape: bf16[208,128], index: 0, kind: input, shape index: {}]
  %s1 = inlined_call_operand.vmem [shape: bf16[128,128], index: 1, kind: input, shape index: {}]
  %s2 = inlined_call_operand.vmem [shape: f32[1,128], index: 2, kind: input, shape index: {}]
  %s3 = inlined_call_operand.vmem [shape: bf16[128,128], index: 3, kind: input, shape index: {}]
  %s4 = inlined_call_operand.vmem [shape: f32[1,128], index: 4, kind: input, shape index: {}]
  %s5 = inlined_call_operand.vmem [shape: bf16[128,128], index: 5, kind: input, shape index: {}]
  %s6 = inlined_call_operand.vmem [shape: f32[1,128], index: 6, kind: input, shape index: {}]
  %s7 = inlined_call_operand.vmem [shape: f32[208,128], index: 7, kind: output, shape index: {}]
  %s8 = sld [smem:[#allocation0]]
  $region61: #{fully_connected_nn_forward.1} parent=0
    _
  %s10 = ssub.s32 1, %s8
  %s11 = scalar_select 0, %s10, %s8
  loop: start=0, step=1, limit=4
  $region2: #{fully_connected_nn_forward.1} parent=0 // loop_pre_header
    _
  $region3: #{fully_connected_nn_forward.1} parent=0 // loop_header
    %s13 = sphi 0, %s17
    %p14 = scmp.ge.s32.totalorder %s13, 4
    %s23 = sphi 0, %s25
    %s26 = sphi 0, %s23
    %s27 = sphi 0, %s26
    %s43 = sphi 0, %s27
    %s47 = sphi 0, %s47
    %s49 = sphi 0, %s47
    %s50 = sphi 0, %s49
    %s64 = sphi 0, %s50
    %s68 = sphi 0, %s68
    %s70 = sphi 0, %s68
    %s71 = sphi 0, %s70
    %s85 = sphi 0, %s71
    %s89 = sphi 0, %s89
    %s91 = sphi 0, %s89
    %s92 = sphi 0, %s91
    %s106 = sphi 0, %s92
    %s110 = sphi 0, %s110
    %s112 = sphi 0, %s110
    %s113 = sphi 0, %s112
    %s127 = sphi 0, %s113
    %s131 = sphi 0, %s131
    %s133 = sphi 0, %s131
    %s134 = sphi 0, %s133
    %s148 = sphi 0, %s134
    %s152 = sphi 0, %s152
    %s154 = sphi 0, %s152
    %s155 = sphi 0, %s154
    %s169 = sphi 0, %s155
    %s175 = sphi 0, %s177
    %s178 = sphi 0, %s175
    %s179 = sphi 0, %s178
    %s195 = sphi 0, %s179
  $region4: #{fully_connected_nn_forward.1} parent=0 // loop_header_branch
    %16 = sbr.rel (%p14) target = $region8
  $region5: #{fully_connected_nn_forward.1} parent=0 // loop_body
    %s18 = ssub.s32 %s13, 1
    %s19 = ssub.s32 %s13, 2
    %s20 = sadd.s32 %s13, 1
    %s21 = ssub.s32 %s13, %s20
    %p22 = scmp.eq.s32.totalorder %s21, 0
    %s24 = sadd.s32 %s23, 1
    %s25 = scalar_select %p22, %s23, %s24
    %p28 = pneg %p22
    %p29 = scmp.eq.s32.totalorder %s13, 1
    %p30 = por %p28, %p29
    %p31 = scmp.ne.s32.totalorder %s23, %s26
    %p32 = scmp.eq.s32.totalorder %s13, 0
    %p33 = por %p31, %p32
    %p34 = scmp.ne.s32.totalorder %s23, %s26
    %p35 = scmp.eq.s32.totalorder %s18, 1
    %p36 = por %p34, %p35
    %p37 = scmp.ne.s32.totalorder %s26, %s27
    %p38 = scmp.eq.s32.totalorder %s18, 0
    %p39 = por %p37, %p38
    %p40 = scmp.ne.s32.totalorder %s26, %s27
    %p41 = scmp.eq.s32.totalorder %s19, 1
    %p42 = por %p40, %p41
    %p44 = scmp.ne.s32.totalorder %s27, %s43
    %p45 = scmp.eq.s32.totalorder %s19, 0
    %p46 = por %p44, %p45
    %s48 = sadd.s32 %s47, 1
    %p51 = scmp.eq.s32.totalorder %s13, 1
    %p52 = scmp.ne.s32.totalorder %s47, %s49
    %p53 = scmp.eq.s32.totalorder %s13, 0
    %p54 = por %p52, %p53
    %p55 = scmp.ne.s32.totalorder %s47, %s49
    %p56 = scmp.eq.s32.totalorder %s18, 1
    %p57 = por %p55, %p56
    %p58 = scmp.ne.s32.totalorder %s49, %s50
    %p59 = scmp.eq.s32.totalorder %s18, 0
    %p60 = por %p58, %p59
    %p61 = scmp.ne.s32.totalorder %s49, %s50
    %p62 = scmp.eq.s32.totalorder %s19, 1
    %p63 = por %p61, %p62
    %p65 = scmp.ne.s32.totalorder %s50, %s64
    %p66 = scmp.eq.s32.totalorder %s19, 0
    %p67 = por %p65, %p66
    %s69 = sadd.s32 %s68, 1
    %p72 = scmp.eq.s32.totalorder %s13, 1
    %p73 = scmp.ne.s32.totalorder %s68, %s70
    %p74 = scmp.eq.s32.totalorder %s13, 0
    %p75 = por %p73, %p74
    %p76 = scmp.ne.s32.totalorder %s68, %s70
    %p77 = scmp.eq.s32.totalorder %s18, 1
    %p78 = por %p76, %p77
    %p79 = scmp.ne.s32.totalorder %s70, %s71
    %p80 = scmp.eq.s32.totalorder %s18, 0
    %p81 = por %p79, %p80
    %p82 = scmp.ne.s32.totalorder %s70, %s71
    %p83 = scmp.eq.s32.totalorder %s19, 1
    %p84 = por %p82, %p83
    %p86 = scmp.ne.s32.totalorder %s71, %s85
    %p87 = scmp.eq.s32.totalorder %s19, 0
    %p88 = por %p86, %p87
    %s90 = sadd.s32 %s89, 1
    %p93 = scmp.eq.s32.totalorder %s13, 1
    %p94 = scmp.ne.s32.totalorder %s89, %s91
    %p95 = scmp.eq.s32.totalorder %s13, 0
    %p96 = por %p94, %p95
    %p97 = scmp.ne.s32.totalorder %s89, %s91
    %p98 = scmp.eq.s32.totalorder %s18, 1
    %p99 = por %p97, %p98
    %p100 = scmp.ne.s32.totalorder %s91, %s92
    %p101 = scmp.eq.s32.totalorder %s18, 0
    %p102 = por %p100, %p101
    %p103 = scmp.ne.s32.totalorder %s91, %s92
    %p104 = scmp.eq.s32.totalorder %s19, 1
    %p105 = por %p103, %p104
    %p107 = scmp.ne.s32.totalorder %s92, %s106
    %p108 = scmp.eq.s32.totalorder %s19, 0
    %p109 = por %p107, %p108
    %s111 = sadd.s32 %s110, 1
    %p114 = scmp.eq.s32.totalorder %s13, 1
    %p115 = scmp.ne.s32.totalorder %s110, %s112
    %p116 = scmp.eq.s32.totalorder %s13, 0
    %p117 = por %p115, %p116
    %p118 = scmp.ne.s32.totalorder %s110, %s112
    %p119 = scmp.eq.s32.totalorder %s18, 1
    %p120 = por %p118, %p119
    %p121 = scmp.ne.s32.totalorder %s112, %s113
    %p122 = scmp.eq.s32.totalorder %s18, 0
    %p123 = por %p121, %p122
    %p124 = scmp.ne.s32.totalorder %s112, %s113
    %p125 = scmp.eq.s32.totalorder %s19, 1
    %p126 = por %p124, %p125
    %p128 = scmp.ne.s32.totalorder %s113, %s127
    %p129 = scmp.eq.s32.totalorder %s19, 0
    %p130 = por %p128, %p129
    %s132 = sadd.s32 %s131, 1
    %p135 = scmp.eq.s32.totalorder %s13, 1
    %p136 = scmp.ne.s32.totalorder %s131, %s133
    %p137 = scmp.eq.s32.totalorder %s13, 0
    %p138 = por %p136, %p137
    %p139 = scmp.ne.s32.totalorder %s131, %s133
    %p140 = scmp.eq.s32.totalorder %s18, 1
    %p141 = por %p139, %p140
    %p142 = scmp.ne.s32.totalorder %s133, %s134
    %p143 = scmp.eq.s32.totalorder %s18, 0
    %p144 = por %p142, %p143
    %p145 = scmp.ne.s32.totalorder %s133, %s134
    %p146 = scmp.eq.s32.totalorder %s19, 1
    %p147 = por %p145, %p146
    %p149 = scmp.ne.s32.totalorder %s134, %s148
    %p150 = scmp.eq.s32.totalorder %s19, 0
    %p151 = por %p149, %p150
    %s153 = sadd.s32 %s152, 1
    %p156 = scmp.eq.s32.totalorder %s13, 1
    %p157 = scmp.ne.s32.totalorder %s152, %s154
    %p158 = scmp.eq.s32.totalorder %s13, 0
    %p159 = por %p157, %p158
    %p160 = scmp.ne.s32.totalorder %s152, %s154
    %p161 = scmp.eq.s32.totalorder %s18, 1
    %p162 = por %p160, %p161
    %p163 = scmp.ne.s32.totalorder %s154, %s155
    %p164 = scmp.eq.s32.totalorder %s18, 0
    %p165 = por %p163, %p164
    %p166 = scmp.ne.s32.totalorder %s154, %s155
    %p167 = scmp.eq.s32.totalorder %s19, 1
    %p168 = por %p166, %p167
    %p170 = scmp.ne.s32.totalorder %s155, %s169
    %p171 = scmp.eq.s32.totalorder %s19, 0
    %p172 = por %p170, %p171
    %s173 = ssub.s32 %s13, %s20
    %p174 = scmp.eq.s32.totalorder %s173, 0
    %s176 = sadd.s32 %s175, 1
    %s177 = scalar_select %p174, %s175, %s176
    %p180 = pneg %p174
    %p181 = scmp.eq.s32.totalorder %s13, 1
    %p182 = por %p180, %p181
    %p183 = scmp.ne.s32.totalorder %s175, %s178
    %p184 = scmp.eq.s32.totalorder %s13, 0
    %p185 = por %p183, %p184
    %p186 = scmp.ne.s32.totalorder %s175, %s178
    %p187 = scmp.eq.s32.totalorder %s18, 1
    %p188 = por %p186, %p187
    %p189 = scmp.ne.s32.totalorder %s178, %s179
    %p190 = scmp.eq.s32.totalorder %s18, 0
    %p191 = por %p189, %p190
    %p192 = scmp.ne.s32.totalorder %s178, %s179
    %p193 = scmp.eq.s32.totalorder %s19, 1
    %p194 = por %p192, %p193
    %p196 = scmp.ne.s32.totalorder %s179, %s195
    %p197 = scmp.eq.s32.totalorder %s19, 0
    %p198 = por %p196, %p197
    %p199 = scmp.le.s32.totalorder 1, %s13
    %p200 = scmp.lt.s32.totalorder %s13, 3
    %p201 = pnand %p199, %p200
    %p202 = pneg %p201
    // Predicated region
    $region9: #{fully_connected_nn_forward.1} parent=5 // pred_check
      _
    $region10: #{fully_connected_nn_forward.1} parent=5 // pred_check_branch
      %204 = sbr.rel (%p201) target = $region12
    $region11: #{fully_connected_nn_forward.1} parent=5 // pred_region
      %s205 = ssub.s32 %s13, 1
      // Predicated region
      $region13: #{fully_connected_nn_forward.1} parent=11 // pred_check
        %p206 = pneg %p60
      $region14: #{fully_connected_nn_forward.1} parent=11 // pred_check_branch
        %208 = sbr.rel (%p206) target = $region16
      $region15: #{fully_connected_nn_forward.1} parent=11 // pred_region
        _
      $region16: #{fully_connected_nn_forward.1} parent=11 // pred_fallthru
        _
      // Predicated region
      $region17: #{fully_connected_nn_forward.1} parent=11 // pred_check
        %p209 = pneg %p81
      $region18: #{fully_connected_nn_forward.1} parent=11 // pred_check_branch
        %211 = sbr.rel (%p209) target = $region20
      $region19: #{fully_connected_nn_forward.1} parent=11 // pred_region
        _
      $region20: #{fully_connected_nn_forward.1} parent=11 // pred_fallthru
        _
      // Predicated region
      $region21: #{fully_connected_nn_forward.1} parent=11 // pred_check
        %p212 = pneg %p102
      $region22: #{fully_connected_nn_forward.1} parent=11 // pred_check_branch
        %214 = sbr.rel (%p212) target = $region24
      $region23: #{fully_connected_nn_forward.1} parent=11 // pred_region
        _
      $region24: #{fully_connected_nn_forward.1} parent=11 // pred_fallthru
        _
      // Predicated region
      $region25: #{fully_connected_nn_forward.1} parent=11 // pred_check
        %p215 = pneg %p123
      $region26: #{fully_connected_nn_forward.1} parent=11 // pred_check_branch
        %217 = sbr.rel (%p215) target = $region28
      $region27: #{fully_connected_nn_forward.1} parent=11 // pred_region
        _
      $region28: #{fully_connected_nn_forward.1} parent=11 // pred_fallthru
        _
      // Predicated region
      $region29: #{fully_connected_nn_forward.1} parent=11 // pred_check
        %p218 = pneg %p144
      $region30: #{fully_connected_nn_forward.1} parent=11 // pred_check_branch
        %220 = sbr.rel (%p218) target = $region32
      $region31: #{fully_connected_nn_forward.1} parent=11 // pred_region
        _
      $region32: #{fully_connected_nn_forward.1} parent=11 // pred_fallthru
        _
      // Predicated region
      $region33: #{fully_connected_nn_forward.1} parent=11 // pred_check
        %p221 = pneg %p165
      $region34: #{fully_connected_nn_forward.1} parent=11 // pred_check_branch
        %223 = sbr.rel (%p221) target = $region36
      $region35: #{fully_connected_nn_forward.1} parent=11 // pred_region
        _
      $region36: #{fully_connected_nn_forward.1} parent=11 // pred_fallthru
        _
    $region12: #{fully_connected_nn_forward.1} parent=5 // pred_fallthru
      _
    %p224 = scmp.lt.s32.totalorder %s13, 2
    // Predicated region
    $region37: #{fully_connected_nn_forward.1} parent=5 // pred_check
      %p225 = pneg %p224
    $region38: #{fully_connected_nn_forward.1} parent=5 // pred_check_branch
      %227 = sbr.rel (%p225) target = $region40
    $region39: #{fully_connected_nn_forward.1} parent=5 // pred_region
      // Predicated region
      $region41: #{fully_connected_nn_forward.1} parent=39 // pred_check
        %p228 = pneg %p33
      $region42: #{fully_connected_nn_forward.1} parent=39 // pred_check_branch
        %230 = sbr.rel (%p228) target = $region44
      $region43: #{fully_connected_nn_forward.1} parent=39 // pred_region
        %s231 = smul.u32 13, %s13
        %p232 = scmp.lt.s32.totalorder %s231, 25
        %s233 = scalar_select %p232, %s231, 25
        %s234 = smul.addr %s233, 4
        %s235 = scalar_lea.vmem %s0, %s234
        %s236 = smul.u32 13, %s13
      $region44: #{fully_connected_nn_forward.1} parent=39 // pred_fallthru
        _
    $region40: #{fully_connected_nn_forward.1} parent=5 // pred_fallthru
      _
    %p237 = scmp.le.s32.totalorder 1, %s13
    %p238 = scmp.lt.s32.totalorder %s13, 3
    %p239 = pnand %p237, %p238
    %p240 = pneg %p239
    // Predicated region
    $region45: #{fully_connected_nn_forward.1} parent=5 // pred_check
      _
    $region46: #{fully_connected_nn_forward.1} parent=5 // pred_check_branch
      %242 = sbr.rel (%p239) target = $region48
    $region47: #{fully_connected_nn_forward.1} parent=5 // pred_region
      %s243 = ssub.s32 %s13, 1
      %s244 = smul.u32 13, %s18
      %p245 = scmp.lt.s32.totalorder %s244, 25
      %s246 = scalar_select %p245, %s244, 25
      %s247 = smul.addr %s246, 4
      %s248 = scalar_lea.vmem %s0, %s247
      %p249 = pneg %p39
      %p250 = pneg %p36
      %p251 = pneg %p60
      %p252 = pneg %p57
      %p253 = pneg %p81
      %p254 = pneg %p78
      %p255 = pneg %p102
      %p256 = pneg %p99
      %p257 = pneg %p123
      %p258 = pneg %p120
      %p259 = pneg %p144
      %p260 = pneg %p141
      %p261 = pneg %p165
      %p262 = pneg %p162
      %p263 = pneg %p191
      %p264 = pneg %p188
      %s265 = smul.u32 13, %s18
      %p266 = scmp.lt.s32.totalorder %s265, 25
      %s267 = scalar_select %p266, %s265, 25
      %s268 = smul.addr %s267, 8
      %s269 = scalar_lea.vmem %s7, %s268
      %s270 = smul.u32 13, %s18
      %p271 = scmp.lt.s32.totalorder %s270, 25
      %s272 = scalar_select %p271, %s270, 25
      %s273 = smul.addr %s272, 4
      %s274 = scalar_lea.vmem %s0, %s273
      %s275 = smul.u32 13, %s18
      %s276 = smul.u32 13, %s18
      %p277 = scmp.lt.s32.totalorder %s276, 25
      %s278 = scalar_select %p277, %s276, 25
      %s279 = smul.addr %s278, 8
      %s280 = scalar_lea.vmem %s7, %s279
      %s281 = smul.u32 13, %s18
      %v283 = vld [vmem:[%s274] sm:$0xf]
      %v284 = vld [vmem:[%s274 + $0x4] sm:$0xf]
      %v285 = vld [vmem:[%s274 + $0x8] sm:$0xf]
      %v286 = vld [vmem:[%s274 + $0xc] sm:$0xf]
      %v287 = vld [vmem:[%s274 + $0x10] sm:$0xf]
      %v288 = vld [vmem:[%s274 + $0x14] sm:$0xf]
      %v289 = vld [vmem:[%s274 + $0x18] sm:$0xf]
      %v290 = vld [vmem:[%s274 + $0x1c] sm:$0xf]
      %v291 = vld [vmem:[%s274 + $0x20] sm:$0xf]
      %v292 = vld [vmem:[%s274 + $0x24] sm:$0xf]
      %v293 = vld [vmem:[%s274 + $0x28] sm:$0xf]
      %v294 = vld [vmem:[%s274 + $0x2c] sm:$0xf]
      %v295 = vld [vmem:[%s274 + $0x30] sm:$0xf]
      %v296 = vld [vmem:[%s1] sm:$0xf]
      %v297 = vld [vmem:[%s1 + $0x4] sm:$0xf]
      %v298 = vld [vmem:[%s1 + $0x8] sm:$0xf]
      %v299 = vld [vmem:[%s1 + $0xc] sm:$0xf]
      %v300 = vld [vmem:[%s1 + $0x10] sm:$0xf]
      %v301 = vld [vmem:[%s1 + $0x14] sm:$0xf]
      %v302 = vld [vmem:[%s1 + $0x18] sm:$0xf]
      %v303 = vld [vmem:[%s1 + $0x1c] sm:$0xf]
      %v304 = vld [vmem:[%s1 + $0x20] sm:$0xf]
      %v305 = vld [vmem:[%s1 + $0x24] sm:$0xf]
      %v306 = vld [vmem:[%s1 + $0x28] sm:$0xf]
      %v307 = vld [vmem:[%s1 + $0x2c] sm:$0xf]
      %v308 = vld [vmem:[%s1 + $0x30] sm:$0xf]
      %v309 = vld [vmem:[%s1 + $0x34] sm:$0xf]
      %v310 = vld [vmem:[%s1 + $0x38] sm:$0xf]
      %v311 = vld [vmem:[%s1 + $0x3c] sm:$0xf]
      %v312 = vld [vmem:[%s2] sm:$0x1]
      %v314 = vlaneseq
      %v315 = vshrl.u32 %v314, 7
      %v316 = vsub.s32 0, %v315
      %v317 = vrot.slane %v312, %v316
      %v332 = vunpack.c.l.b16 %v283
      %v333 = vunpack.c.l.b16 %v284
      %v334 = vunpack.c.l.b16 %v285
      %v335 = vunpack.c.l.b16 %v286
      %v336 = vunpack.c.l.b16 %v287
      %v337 = vunpack.c.l.b16 %v288
      %v338 = vunpack.c.l.b16 %v289
      %v339 = vunpack.c.l.b16 %v290
      %v340 = vunpack.c.l.b16 %v291
      %v341 = vunpack.c.l.b16 %v292
      %v342 = vunpack.c.l.b16 %v293
      %v343 = vunpack.c.l.b16 %v294
      %v344 = vunpack.c.l.b16 %v295
      %v345 = vpack.c.b16 %v333, %v332
      %v346 = vpack.c.b16 %v335, %v334
      %v347 = vpack.c.b16 %v337, %v336
      %v348 = vpack.c.b16 %v339, %v338
      %v349 = vpack.c.b16 %v341, %v340
      %v350 = vpack.c.b16 %v343, %v342
      %v351 = vpack.c.b16 %v344, %v344
      %v375 = vunpack.c.l.b16 %v296
      %v376 = vunpack.c.l.b16 %v297
      %v377 = vunpack.c.l.b16 %v298
      %v378 = vunpack.c.l.b16 %v299
      %v379 = vunpack.c.l.b16 %v300
      %v380 = vunpack.c.l.b16 %v301
      %v381 = vunpack.c.l.b16 %v302
      %v382 = vunpack.c.l.b16 %v303
      %v383 = vunpack.c.l.b16 %v304
      %v384 = vunpack.c.l.b16 %v305
      %v385 = vunpack.c.l.b16 %v306
      %v386 = vunpack.c.l.b16 %v307
      %v387 = vunpack.c.l.b16 %v308
      %v388 = vunpack.c.l.b16 %v309
      %v389 = vunpack.c.l.b16 %v310
      %v390 = vunpack.c.l.b16 %v311
      %v391 = vpack.c.b16 %v376, %v375
      %v392 = vpack.c.b16 %v378, %v377
      %v393 = vpack.c.b16 %v380, %v379
      %v394 = vpack.c.b16 %v382, %v381
      %v395 = vpack.c.b16 %v384, %v383
      %v396 = vpack.c.b16 %v386, %v385
      %v397 = vpack.c.b16 %v388, %v387
      %v398 = vpack.c.b16 %v390, %v389
      %407 = vmatprep.subr.bf16.mxu0 0
      %408 = vmatpush1.bf16.msra.mxu0 %v391
      %409 = vmatprep.subr.bf16.mxu0 0
      %410 = vmatpush1.bf16.msra.mxu0 %v392
      %411 = vmatprep.subr.bf16.mxu0 0
      %412 = vmatpush1.bf16.msra.mxu0 %v393
      %413 = vmatprep.subr.bf16.mxu0 0
      %414 = vmatpush1.bf16.msra.mxu0 %v394
      %415 = vmatprep.subr.bf16.mxu0 0
      %416 = vmatpush1.bf16.msra.mxu0 %v395
      %417 = vmatprep.subr.bf16.mxu0 0
      %418 = vmatpush1.bf16.msra.mxu0 %v396
      %419 = vmatprep.subr.bf16.mxu0 0
      %420 = vmatpush1.bf16.msra.mxu0 %v397
      %421 = vmatprep.subr.bf16.mxu0 0
      %422 = vmatpush1.bf16.msra.mxu0 %v398
      %423 = vmatprep.subr.bf16.mxu0 0
      %424 = vmatpush1.bf16.msra.mxu0 0
      %425 = vmatprep.subr.bf16.mxu0 0
      %426 = vmatpush1.bf16.msra.mxu0 0
      %427 = vmatprep.subr.bf16.mxu0 0
      %428 = vmatpush1.bf16.msra.mxu0 0
      %429 = vmatprep.subr.bf16.mxu0 0
      %430 = vmatpush1.bf16.msra.mxu0 0
      %431 = vmatprep.subr.bf16.mxu0 0
      %432 = vmatpush1.bf16.msra.mxu0 0
      %433 = vmatprep.subr.bf16.mxu0 0
      %434 = vmatpush1.bf16.msra.mxu0 0
      %435 = vmatprep.subr.bf16.mxu0 0
      %436 = vmatpush1.bf16.msra.mxu0 0
      %437 = vmatprep.subr.bf16.mxu0 0
      %438 = vmatpush1.bf16.msra.mxu0 0
      %439 = vmatprep.mubr.bf16.mxu0 0
      %440 = vmatmul.mubr.bf16.gmra.mrb[0].mxu0 %v345
      %v441 = vpop.f32.mrb[0].mxu0
      %v442 = vadd.f32 %v317, %v441
      %v443 = vpop.f32.mrb[0].mxu0
      %v444 = vpop.f32.mrb[0].mxu0
      %v445 = vadd.f32 %v317, %v444
      %v446 = vpop.f32.mrb[0].mxu0
      %447 = vmatprep.mubr.bf16.mxu0 0
      %448 = vmatmul.mubr.bf16.gmra.mrb[0].mxu0 %v346
      %v449 = vpop.f32.mrb[0].mxu0
      %v450 = vadd.f32 %v317, %v449
      %v451 = vpop.f32.mrb[0].mxu0
      %v452 = vpop.f32.mrb[0].mxu0
      %v453 = vadd.f32 %v317, %v452
      %v454 = vpop.f32.mrb[0].mxu0
      %455 = vmatprep.mubr.bf16.mxu0 0
      %456 = vmatmul.mubr.bf16.gmra.mrb[0].mxu0 %v347
      %v457 = vpop.f32.mrb[0].mxu0
      %v458 = vadd.f32 %v317, %v457
      %v459 = vpop.f32.mrb[0].mxu0
      %v460 = vpop.f32.mrb[0].mxu0
      %v461 = vadd.f32 %v317, %v460
      %v462 = vpop.f32.mrb[0].mxu0
      %463 = vmatprep.mubr.bf16.mxu0 0
      %464 = vmatmul.mubr.bf16.gmra.mrb[0].mxu0 %v348
      %v465 = vpop.f32.mrb[0].mxu0
      %v466 = vadd.f32 %v317, %v465
      %v467 = vpop.f32.mrb[0].mxu0
      %v468 = vpop.f32.mrb[0].mxu0
      %v469 = vadd.f32 %v317, %v468
      %v470 = vpop.f32.mrb[0].mxu0
      %471 = vmatprep.mubr.bf16.mxu0 0
      %472 = vmatmul.mubr.bf16.gmra.mrb[0].mxu0 %v349
      %v473 = vpop.f32.mrb[0].mxu0
      %v474 = vadd.f32 %v317, %v473
      %v475 = vpop.f32.mrb[0].mxu0
      %v476 = vpop.f32.mrb[0].mxu0
      %v477 = vadd.f32 %v317, %v476
      %v478 = vpop.f32.mrb[0].mxu0
      %479 = vmatprep.mubr.bf16.mxu0 0
      %480 = vmatmul.mubr.bf16.gmra.mrb[0].mxu0 %v350
      %v481 = vpop.f32.mrb[0].mxu0
      %v482 = vadd.f32 %v317, %v481
      %v483 = vpop.f32.mrb[0].mxu0
      %v484 = vpop.f32.mrb[0].mxu0
      %v485 = vadd.f32 %v317, %v484
      %v486 = vpop.f32.mrb[0].mxu0
      %487 = vmatprep.mubr.bf16.mxu0 0
      %488 = vmatmul.mubr.bf16.gmra.mrb[0].mxu0 %v351
      %v489 = vpop.f32.mrb[0].mxu0
      %v490 = vadd.f32 %v317, %v489
      %v491 = vpop.f32.mrb[0].mxu0
      %v492 = vpop.f32.mrb[0].mxu0
      %v493 = vpop.f32.mrb[0].mxu0
      %494 = vdwg.mxu0
      %v495 = vmax.f32 %v442, 0.0
      %v496 = vmax.f32 %v445, 0.0
      %v497 = vmax.f32 %v450, 0.0
      %v498 = vmax.f32 %v453, 0.0
      %v499 = vmax.f32 %v458, 0.0
      %v500 = vmax.f32 %v461, 0.0
      %v501 = vmax.f32 %v466, 0.0
      %v502 = vmax.f32 %v469, 0.0
      %v503 = vmax.f32 %v474, 0.0
      %v504 = vmax.f32 %v477, 0.0
      %v505 = vmax.f32 %v482, 0.0
      %v506 = vmax.f32 %v485, 0.0
      %v507 = vmax.f32 %v490, 0.0
      %v508 = vld [vmem:[%s3] sm:$0xf]
      %v509 = vld [vmem:[%s3 + $0x4] sm:$0xf]
      %v510 = vld [vmem:[%s3 + $0x8] sm:$0xf]
      %v511 = vld [vmem:[%s3 + $0xc] sm:$0xf]
      %v512 = vld [vmem:[%s3 + $0x10] sm:$0xf]
      %v513 = vld [vmem:[%s3 + $0x14] sm:$0xf]
      %v514 = vld [vmem:[%s3 + $0x18] sm:$0xf]
      %v515 = vld [vmem:[%s3 + $0x1c] sm:$0xf]
      %v516 = vld [vmem:[%s3 + $0x20] sm:$0xf]
      %v517 = vld [vmem:[%s3 + $0x24] sm:$0xf]
      %v518 = vld [vmem:[%s3 + $0x28] sm:$0xf]
      %v519 = vld [vmem:[%s3 + $0x2c] sm:$0xf]
      %v520 = vld [vmem:[%s3 + $0x30] sm:$0xf]
      %v521 = vld [vmem:[%s3 + $0x34] sm:$0xf]
      %v522 = vld [vmem:[%s3 + $0x38] sm:$0xf]
      %v523 = vld [vmem:[%s3 + $0x3c] sm:$0xf]
      %v524 = vld [vmem:[%s4] sm:$0x1]
      %v525 = vpack.c.bf16 %v496, %v495
      %v526 = vpack.c.bf16 %v498, %v497
      %v527 = vpack.c.bf16 %v500, %v499
      %v528 = vpack.c.bf16 %v502, %v501
      %v529 = vpack.c.bf16 %v504, %v503
      %v530 = vpack.c.bf16 %v506, %v505
      %v531 = vpack.c.bf16 %v507, %v507
      %v533 = vlaneseq
      %v534 = vshrl.u32 %v533, 7
      %v535 = vsub.s32 0, %v534
      %v536 = vrot.slane %v524, %v535
      %v554 = vunpack.c.l.b16 %v508
      %v555 = vunpack.c.l.b16 %v509
      %v556 = vunpack.c.l.b16 %v510
      %v557 = vunpack.c.l.b16 %v511
      %v558 = vunpack.c.l.b16 %v512
      %v559 = vunpack.c.l.b16 %v513
      %v560 = vunpack.c.l.b16 %v514
      %v561 = vunpack.c.l.b16 %v515
      %v562 = vunpack.c.l.b16 %v516
      %v563 = vunpack.c.l.b16 %v517
      %v564 = vunpack.c.l.b16 %v518
      %v565 = vunpack.c.l.b16 %v519
      %v566 = vunpack.c.l.b16 %v520
      %v567 = vunpack.c.l.b16 %v521
      %v568 = vunpack.c.l.b16 %v522
      %v569 = vunpack.c.l.b16 %v523
      %v570 = vpack.c.b16 %v555, %v554
      %v571 = vpack.c.b16 %v557, %v556
      %v572 = vpack.c.b16 %v559, %v558
      %v573 = vpack.c.b16 %v561, %v560
      %v574 = vpack.c.b16 %v563, %v562
      %v575 = vpack.c.b16 %v565, %v564
      %v576 = vpack.c.b16 %v567, %v566
      %v577 = vpack.c.b16 %v569, %v568
      %586 = vmatprep.subr.bf16.mxu0 0
      %587 = vmatpush1.bf16.msra.mxu0 %v570
      %588 = vmatprep.subr.bf16.mxu0 0
      %589 = vmatpush1.bf16.msra.mxu0 %v571
      %590 = vmatprep.subr.bf16.mxu0 0
      %591 = vmatpush1.bf16.msra.mxu0 %v572
      %592 = vmatprep.subr.bf16.mxu0 0
      %593 = vmatpush1.bf16.msra.mxu0 %v573
      %594 = vmatprep.subr.bf16.mxu0 0
      %595 = vmatpush1.bf16.msra.mxu0 %v574
      %596 = vmatprep.subr.bf16.mxu0 0
      %597 = vmatpush1.bf16.msra.mxu0 %v575
      %598 = vmatprep.subr.bf16.mxu0 0
      %599 = vmatpush1.bf16.msra.mxu0 %v576
      %600 = vmatprep.subr.bf16.mxu0 0
      %601 = vmatpush1.bf16.msra.mxu0 %v577
      %602 = vmatprep.subr.bf16.mxu0 0
      %603 = vmatpush1.bf16.msra.mxu0 0
      %604 = vmatprep.subr.bf16.mxu0 0
      %605 = vmatpush1.bf16.msra.mxu0 0
      %606 = vmatprep.subr.bf16.mxu0 0
      %607 = vmatpush1.bf16.msra.mxu0 0
      %608 = vmatprep.subr.bf16.mxu0 0
      %609 = vmatpush1.bf16.msra.mxu0 0
      %610 = vmatprep.subr.bf16.mxu0 0
      %611 = vmatpush1.bf16.msra.mxu0 0
      %612 = vmatprep.subr.bf16.mxu0 0
      %613 = vmatpush1.bf16.msra.mxu0 0
      %614 = vmatprep.subr.bf16.mxu0 0
      %615 = vmatpush1.bf16.msra.mxu0 0
      %616 = vmatprep.subr.bf16.mxu0 0
      %617 = vmatpush1.bf16.msra.mxu0 0
      %618 = vmatprep.mubr.bf16.mxu0 0
      %619 = vmatmul.mubr.bf16.gmra.mrb[0].mxu0 %v525
      %v620 = vpop.f32.mrb[0].mxu0
      %v621 = vadd.f32 %v536, %v620
      %v622 = vpop.f32.mrb[0].mxu0
      %v623 = vpop.f32.mrb[0].mxu0
      %v624 = vadd.f32 %v536, %v623
      %v625 = vpop.f32.mrb[0].mxu0
      %626 = vmatprep.mubr.bf16.mxu0 0
      %627 = vmatmul.mubr.bf16.gmra.mrb[0].mxu0 %v526
      %v628 = vpop.f32.mrb[0].mxu0
      %v629 = vadd.f32 %v536, %v628
      %v630 = vpop.f32.mrb[0].mxu0
      %v631 = vpop.f32.mrb[0].mxu0
      %v632 = vadd.f32 %v536, %v631
      %v633 = vpop.f32.mrb[0].mxu0
      %634 = vmatprep.mubr.bf16.mxu0 0
      %635 = vmatmul.mubr.bf16.gmra.mrb[0].mxu0 %v527
      %v636 = vpop.f32.mrb[0].mxu0
      %v637 = vadd.f32 %v536, %v636
      %v638 = vpop.f32.mrb[0].mxu0
      %v639 = vpop.f32.mrb[0].mxu0
      %v640 = vadd.f32 %v536, %v639
      %v641 = vpop.f32.mrb[0].mxu0
      %642 = vmatprep.mubr.bf16.mxu0 0
      %643 = vmatmul.mubr.bf16.gmra.mrb[0].mxu0 %v528
      %v644 = vpop.f32.mrb[0].mxu0
      %v645 = vadd.f32 %v536, %v644
      %v646 = vpop.f32.mrb[0].mxu0
      %v647 = vpop.f32.mrb[0].mxu0
      %v648 = vadd.f32 %v536, %v647
      %v649 = vpop.f32.mrb[0].mxu0
      %650 = vmatprep.mubr.bf16.mxu0 0
      %651 = vmatmul.mubr.bf16.gmra.mrb[0].mxu0 %v529
      %v652 = vpop.f32.mrb[0].mxu0
      %v653 = vadd.f32 %v536, %v652
      %v654 = vpop.f32.mrb[0].mxu0
      %v655 = vpop.f32.mrb[0].mxu0
      %v656 = vadd.f32 %v536, %v655
      %v657 = vpop.f32.mrb[0].mxu0
      %658 = vmatprep.mubr.bf16.mxu0 0
      %659 = vmatmul.mubr.bf16.gmra.mrb[0].mxu0 %v530
      %v660 = vpop.f32.mrb[0].mxu0
      %v661 = vadd.f32 %v536, %v660
      %v662 = vpop.f32.mrb[0].mxu0
      %v663 = vpop.f32.mrb[0].mxu0
      %v664 = vadd.f32 %v536, %v663
      %v665 = vpop.f32.mrb[0].mxu0
      %666 = vmatprep.mubr.bf16.mxu0 0
      %667 = vmatmul.mubr.bf16.gmra.mrb[0].mxu0 %v531
      %v668 = vpop.f32.mrb[0].mxu0
      %v669 = vadd.f32 %v536, %v668
      %v670 = vpop.f32.mrb[0].mxu0
      %v671 = vpop.f32.mrb[0].mxu0
      %v672 = vpop.f32.mrb[0].mxu0
      %673 = vdwg.mxu0
      %v674 = vmax.f32 %v621, 0.0
      %v675 = vmax.f32 %v624, 0.0
      %v676 = vmax.f32 %v629, 0.0
      %v677 = vmax.f32 %v632, 0.0
      %v678 = vmax.f32 %v637, 0.0
      %v679 = vmax.f32 %v640, 0.0
      %v680 = vmax.f32 %v645, 0.0
      %v681 = vmax.f32 %v648, 0.0
      %v682 = vmax.f32 %v653, 0.0
      %v683 = vmax.f32 %v656, 0.0
      %v684 = vmax.f32 %v661, 0.0
      %v685 = vmax.f32 %v664, 0.0
      %v686 = vmax.f32 %v669, 0.0
      %v687 = vld [vmem:[%s5] sm:$0xf]
      %v688 = vld [vmem:[%s5 + $0x4] sm:$0xf]
      %v689 = vld [vmem:[%s5 + $0x8] sm:$0xf]
      %v690 = vld [vmem:[%s5 + $0xc] sm:$0xf]
      %v691 = vld [vmem:[%s5 + $0x10] sm:$0xf]
      %v692 = vld [vmem:[%s5 + $0x14] sm:$0xf]
      %v693 = vld [vmem:[%s5 + $0x18] sm:$0xf]
      %v694 = vld [vmem:[%s5 + $0x1c] sm:$0xf]
      %v695 = vld [vmem:[%s5 + $0x20] sm:$0xf]
      %v696 = vld [vmem:[%s5 + $0x24] sm:$0xf]
      %v697 = vld [vmem:[%s5 + $0x28] sm:$0xf]
      %v698 = vld [vmem:[%s5 + $0x2c] sm:$0xf]
      %v699 = vld [vmem:[%s5 + $0x30] sm:$0xf]
      %v700 = vld [vmem:[%s5 + $0x34] sm:$0xf]
      %v701 = vld [vmem:[%s5 + $0x38] sm:$0xf]
      %v702 = vld [vmem:[%s5 + $0x3c] sm:$0xf]
      %v703 = vld [vmem:[%s6] sm:$0x1]
      %v704 = vpack.c.bf16 %v675, %v674
      %v705 = vpack.c.bf16 %v677, %v676
      %v706 = vpack.c.bf16 %v679, %v678
      %v707 = vpack.c.bf16 %v681, %v680
      %v708 = vpack.c.bf16 %v683, %v682
      %v709 = vpack.c.bf16 %v685, %v684
      %v710 = vpack.c.bf16 %v686, %v686
      %v712 = vlaneseq
      %v713 = vshrl.u32 %v712, 7
      %v714 = vsub.s32 0, %v713
      %v715 = vrot.slane %v703, %v714
      %v733 = vunpack.c.l.b16 %v687
      %v734 = vunpack.c.l.b16 %v688
      %v735 = vunpack.c.l.b16 %v689
      %v736 = vunpack.c.l.b16 %v690
      %v737 = vunpack.c.l.b16 %v691
      %v738 = vunpack.c.l.b16 %v692
      %v739 = vunpack.c.l.b16 %v693
      %v740 = vunpack.c.l.b16 %v694
      %v741 = vunpack.c.l.b16 %v695
      %v742 = vunpack.c.l.b16 %v696
      %v743 = vunpack.c.l.b16 %v697
      %v744 = vunpack.c.l.b16 %v698
      %v745 = vunpack.c.l.b16 %v699
      %v746 = vunpack.c.l.b16 %v700
      %v747 = vunpack.c.l.b16 %v701
      %v748 = vunpack.c.l.b16 %v702
      %v749 = vpack.c.b16 %v734, %v733
      %v750 = vpack.c.b16 %v736, %v735
      %v751 = vpack.c.b16 %v738, %v737
      %v752 = vpack.c.b16 %v740, %v739
      %v753 = vpack.c.b16 %v742, %v741
      %v754 = vpack.c.b16 %v744, %v743
      %v755 = vpack.c.b16 %v746, %v745
      %v756 = vpack.c.b16 %v748, %v747
      %765 = vmatprep.subr.bf16.mxu0 0
      %766 = vmatpush1.bf16.msra.mxu0 %v749
      %767 = vmatprep.subr.bf16.mxu0 0
      %768 = vmatpush1.bf16.msra.mxu0 %v750
      %769 = vmatprep.subr.bf16.mxu0 0
      %770 = vmatpush1.bf16.msra.mxu0 %v751
      %771 = vmatprep.subr.bf16.mxu0 0
      %772 = vmatpush1.bf16.msra.mxu0 %v752
      %773 = vmatprep.subr.bf16.mxu0 0
      %774 = vmatpush1.bf16.msra.mxu0 %v753
      %775 = vmatprep.subr.bf16.mxu0 0
      %776 = vmatpush1.bf16.msra.mxu0 %v754
      %777 = vmatprep.subr.bf16.mxu0 0
      %778 = vmatpush1.bf16.msra.mxu0 %v755
      %779 = vmatprep.subr.bf16.mxu0 0
      %780 = vmatpush1.bf16.msra.mxu0 %v756
      %781 = vmatprep.subr.bf16.mxu0 0
      %782 = vmatpush1.bf16.msra.mxu0 0
      %783 = vmatprep.subr.bf16.mxu0 0
      %784 = vmatpush1.bf16.msra.mxu0 0
      %785 = vmatprep.subr.bf16.mxu0 0
      %786 = vmatpush1.bf16.msra.mxu0 0
      %787 = vmatprep.subr.bf16.mxu0 0
      %788 = vmatpush1.bf16.msra.mxu0 0
      %789 = vmatprep.subr.bf16.mxu0 0
      %790 = vmatpush1.bf16.msra.mxu0 0
      %791 = vmatprep.subr.bf16.mxu0 0
      %792 = vmatpush1.bf16.msra.mxu0 0
      %793 = vmatprep.subr.bf16.mxu0 0
      %794 = vmatpush1.bf16.msra.mxu0 0
      %795 = vmatprep.subr.bf16.mxu0 0
      %796 = vmatpush1.bf16.msra.mxu0 0
      %797 = vmatprep.mubr.bf16.mxu0 0
      %798 = vmatmul.mubr.bf16.gmra.mrb[0].mxu0 %v704
      %v799 = vpop.f32.mrb[0].mxu0
      %v800 = vadd.f32 %v715, %v799
      %v801 = vpop.f32.mrb[0].mxu0
      %v802 = vpop.f32.mrb[0].mxu0
      %v803 = vadd.f32 %v715, %v802
      %v804 = vpop.f32.mrb[0].mxu0
      %805 = vmatprep.mubr.bf16.mxu0 0
      %806 = vmatmul.mubr.bf16.gmra.mrb[0].mxu0 %v705
      %v807 = vpop.f32.mrb[0].mxu0
      %v808 = vadd.f32 %v715, %v807
      %v809 = vpop.f32.mrb[0].mxu0
      %v810 = vpop.f32.mrb[0].mxu0
      %v811 = vadd.f32 %v715, %v810
      %v812 = vpop.f32.mrb[0].mxu0
      %813 = vmatprep.mubr.bf16.mxu0 0
      %814 = vmatmul.mubr.bf16.gmra.mrb[0].mxu0 %v706
      %v815 = vpop.f32.mrb[0].mxu0
      %v816 = vadd.f32 %v715, %v815
      %v817 = vpop.f32.mrb[0].mxu0
      %v818 = vpop.f32.mrb[0].mxu0
      %v819 = vadd.f32 %v715, %v818
      %v820 = vpop.f32.mrb[0].mxu0
      %821 = vmatprep.mubr.bf16.mxu0 0
      %822 = vmatmul.mubr.bf16.gmra.mrb[0].mxu0 %v707
      %v823 = vpop.f32.mrb[0].mxu0
      %v824 = vadd.f32 %v715, %v823
      %v825 = vpop.f32.mrb[0].mxu0
      %v826 = vpop.f32.mrb[0].mxu0
      %v827 = vadd.f32 %v715, %v826
      %v828 = vpop.f32.mrb[0].mxu0
      %829 = vmatprep.mubr.bf16.mxu0 0
      %830 = vmatmul.mubr.bf16.gmra.mrb[0].mxu0 %v708
      %v831 = vpop.f32.mrb[0].mxu0
      %v832 = vadd.f32 %v715, %v831
      %v833 = vpop.f32.mrb[0].mxu0
      %v834 = vpop.f32.mrb[0].mxu0
      %v835 = vadd.f32 %v715, %v834
      %v836 = vpop.f32.mrb[0].mxu0
      %837 = vmatprep.mubr.bf16.mxu0 0
      %838 = vmatmul.mubr.bf16.gmra.mrb[0].mxu0 %v709
      %v839 = vpop.f32.mrb[0].mxu0
      %v840 = vadd.f32 %v715, %v839
      %v841 = vpop.f32.mrb[0].mxu0
      %v842 = vpop.f32.mrb[0].mxu0
      %v843 = vadd.f32 %v715, %v842
      %v844 = vpop.f32.mrb[0].mxu0
      %845 = vmatprep.mubr.bf16.mxu0 0
      %846 = vmatmul.mubr.bf16.gmra.mrb[0].mxu0 %v710
      %v847 = vpop.f32.mrb[0].mxu0
      %v848 = vadd.f32 %v715, %v847
      %v849 = vpop.f32.mrb[0].mxu0
      %v850 = vpop.f32.mrb[0].mxu0
      %v851 = vpop.f32.mrb[0].mxu0
      %852 = vdwg.mxu0
      %v853 = vmax.f32 %v800, 0.0
      %v854 = vmax.f32 %v803, 0.0
      %v855 = vmax.f32 %v808, 0.0
      %v856 = vmax.f32 %v811, 0.0
      %v857 = vmax.f32 %v816, 0.0
      %v858 = vmax.f32 %v819, 0.0
      %v859 = vmax.f32 %v824, 0.0
      %v860 = vmax.f32 %v827, 0.0
      %v861 = vmax.f32 %v832, 0.0
      %v862 = vmax.f32 %v835, 0.0
      %v863 = vmax.f32 %v840, 0.0
      %v864 = vmax.f32 %v843, 0.0
      %v865 = vmax.f32 %v848, 0.0
      %866 = vst [vmem:[%s280] sm:$0xff] %v853
      %867 = vst [vmem:[%s280 + $0x8] sm:$0xff] %v854
      %868 = vst [vmem:[%s280 + $0x10] sm:$0xff] %v855
      %869 = vst [vmem:[%s280 + $0x18] sm:$0xff] %v856
      %870 = vst [vmem:[%s280 + $0x20] sm:$0xff] %v857
      %871 = vst [vmem:[%s280 + $0x28] sm:$0xff] %v858
      %872 = vst [vmem:[%s280 + $0x30] sm:$0xff] %v859
      %873 = vst [vmem:[%s280 + $0x38] sm:$0xff] %v860
      %874 = vst [vmem:[%s280 + $0x40] sm:$0xff] %v861
      %875 = vst [vmem:[%s280 + $0x48] sm:$0xff] %v862
      %876 = vst [vmem:[%s280 + $0x50] sm:$0xff] %v863
      %877 = vst [vmem:[%s280 + $0x58] sm:$0xff] %v864
      %878 = vst [vmem:[%s280 + $0x60] sm:$0xff] %v865
      %s879 = smul.u32 13, %s18
      %p880 = scmp.lt.s32.totalorder %s879, 25
      %s881 = scalar_select %p880, %s879, 25
      %s882 = smul.addr %s881, 8
      %s883 = scalar_lea.vmem %s7, %s882
      // Predicated region
      $region49: #{fully_connected_nn_forward.1} parent=47 // pred_check
        %p884 = pneg %p188
      $region50: #{fully_connected_nn_forward.1} parent=47 // pred_check_branch
        %886 = sbr.rel (%p884) target = $region52
      $region51: #{fully_connected_nn_forward.1} parent=47 // pred_region
        %s887 = smul.u32 13, %s18
      $region52: #{fully_connected_nn_forward.1} parent=47 // pred_fallthru
        _
    $region48: #{fully_connected_nn_forward.1} parent=5 // pred_fallthru
      _
    %p888 = scmp.le.s32.totalorder 2, %s13
    // Predicated region
    $region53: #{fully_connected_nn_forward.1} parent=5 // pred_check
      %p889 = pneg %p888
    $region54: #{fully_connected_nn_forward.1} parent=5 // pred_check_branch
      %891 = sbr.rel (%p889) target = $region56
    $region55: #{fully_connected_nn_forward.1} parent=5 // pred_region
      %s892 = ssub.s32 %s13, 2
      // Predicated region
      $region57: #{fully_connected_nn_forward.1} parent=55 // pred_check
        %p893 = pneg %p194
      $region58: #{fully_connected_nn_forward.1} parent=55 // pred_check_branch
        %895 = sbr.rel (%p893) target = $region60
      $region59: #{fully_connected_nn_forward.1} parent=55 // pred_region
        %s896 = smul.u32 13, %s19
        %p897 = scmp.lt.s32.totalorder %s896, 25
        %s898 = scalar_select %p897, %s896, 25
        %s899 = smul.addr %s898, 8
        %s900 = scalar_lea.vmem %s7, %s899
      $region60: #{fully_connected_nn_forward.1} parent=55 // pred_fallthru
        _
    $region56: #{fully_connected_nn_forward.1} parent=5 // pred_fallthru
      _
  $region6: #{fully_connected_nn_forward.1} parent=0 // loop_footer
    %s17 = sadd.s32 1, %s13
  $region7: #{fully_connected_nn_forward.1} parent=0 // loop_footer_branch
    %12 = sbr.rel target = $region3
  $region8: #{fully_connected_nn_forward.1} parent=0 // loop_exit
    _

</llo_original>
